<compile_context>
chip_gen: v5e
topology: v5e:2x2
jax: 0.10.0
libtpu: 0.0.40
codegen_flags: <defaults>
</compile_context>

<pallas_src>
import functools

import jax
import jax.numpy as jnp
from jax import lax
from jax.experimental import pallas as pl
from jax.experimental.pallas import tpu as pltpu


# ------------------------------- kernel --------------------------------------
def basic_block_kernel(x_ref, w1_ref, w2_ref, s1_ref, b1_ref, s2_ref, b2_ref,
                       a_ref, out_ref, *, img_h):
    # x_ref:   (Mb, W*C)   lane-dense activations, Mb = Nb*H rows
    # w*_ref:  (3*W*Cin, W*Cout) bf16 fused banded conv weights (kh-major on K)
    # s*/b*:   (1, W*C)    folded BN scale / shift (tiled over W)
    # a_ref:   SMEM (1,)   PReLU alpha
    mb = x_ref.shape[0]
    alpha = a_ref[0]

    # Row masks at image boundaries (kills cross-batch-item row leakage and
    # implements the conv's zero padding along H).
    rows = lax.broadcasted_iota(jnp.int32, (mb, 1), 0)
    has_up = (rows % img_h) != 0                 # row above belongs to same image
    has_dn = (rows % img_h) != (img_h - 1)       # row below belongs to same image

    def conv3x3(act_f32, w_ref):
        # Fused conv: out[r] = act[r-1] @ B0 + act[r] @ B1 + act[r+1] @ B2
        # realized as a single K = 3*W*Cin matmul.  Rolls go to the XLU slot.
        up = jnp.where(has_up, pltpu.roll(act_f32, 1, axis=0), 0.0)
        dn = jnp.where(has_dn, pltpu.roll(act_f32, mb - 1, axis=0), 0.0)
        a_cat = jnp.concatenate([up, act_f32, dn], axis=1).astype(w_ref.dtype)
        return jnp.dot(a_cat, w_ref[...], preferred_element_type=jnp.float32)

    # ---- stage 1: bn1 -> PReLU -> conv1 ----
    y = x_ref[...].astype(jnp.float32) * s1_ref[...] + b1_ref[...]
    y = jnp.where(y >= 0.0, y, alpha * y)
    z = conv3x3(y, w1_ref)

    # ---- stage 2: bn2 -> PReLU -> conv2 ----
    z = z * s2_ref[...] + b2_ref[...]
    z = jnp.where(z >= 0.0, z, alpha * z)
    o = conv3x3(z, w2_ref)

    # ---- residual add (re-read x at the store; lane-dense full-width vst) ----
    out_ref[...] = (o + x_ref[...].astype(jnp.float32)).astype(out_ref.dtype)


# ------------------------ one-time parameter folding -------------------------
def _banded_conv_weights(w_hwio, W, dtype=jnp.bfloat16):
    """(3,3,Cin,Cout) HWIO -> (3, W*Cin, W*Cout) block-Toeplitz along width.

    B[kh, wi*Cin+ci, wo*Cout+co] = w[kh, wi-wo+1, ci, co] if |wi-wo| <= 1 else 0
    so one matmul per kh performs the kw-tap sum with K = W*Cin, and the width
    zero-padding comes for free (out-of-band taps are simply absent).
    """
    _, _, Cin, Cout = w_hwio.shape
    wi = jnp.arange(W)[:, None]                  # input  column block
    wo = jnp.arange(W)[None, :]                  # output column block
    kw = wi - wo + 1
    valid = ((kw >= 0) & (kw <= 2)).astype(w_hwio.dtype)[:, :, None, None]
    kw_c = jnp.clip(kw, 0, 2)

    def one(w_kh):                               # w_kh: (3, Cin, Cout)
        blocks = w_kh[kw_c] * valid              # (W, W, Cin, Cout)
        return blocks.transpose(0, 2, 1, 3).reshape(W * Cin, W * Cout)

    return jnp.stack([one(w_hwio[kh]) for kh in range(3)]).astype(dtype)


def fold_basic_block_params(params, W, eps=1e-5):
    """Hoisted one-time work: BN folding + banded/fused conv weights.

    Call once and cache the result across forward calls (perf review: this is
    separate XLA work that would otherwise dominate a us-scale fused kernel).
    """
    w1, w2 = params["w1"], params["w2"]          # HWIO: (3,3,C,P), (3,3,P,P)
    C, P = w1.shape[2], w1.shape[3]

    s1 = params["gamma1"] / jnp.sqrt(params["var1"] + eps)
    b1 = params["beta1"] - params["mean1"] * s1
    s2 = params["gamma2"] / jnp.sqrt(params["var2"] + eps)
    b2 = params["beta2"] - params["mean2"] * s2

    folded = dict(
        C=C, P=P, W=W,
        s1=jnp.tile(s1, W).reshape(1, W * C).astype(jnp.float32),
        b1=jnp.tile(b1, W).reshape(1, W * C).astype(jnp.float32),
        s2=jnp.tile(s2, W).reshape(1, W * P).astype(jnp.float32),
        b2=jnp.tile(b2, W).reshape(1, W * P).astype(jnp.float32),
        alpha=params["alpha"].reshape(1).astype(jnp.float32),
        # fused banded weights: (3, W*Cin, W*Cout) -> (3*W*Cin, W*Cout), kh-major
        w1cat=_banded_conv_weights(w1, W).reshape(3 * W * C, W * P),
        w2cat=_banded_conv_weights(w2, W).reshape(3 * W * P, W * P),
    )
    return folded


# ------------------------------ wrapper ---------------------------------------
def basic_block(x_nchw, folded, stride=1):
    """Pallas BasicBlock forward.  x_nchw: (N, C, H, W) float32."""
    # TODO(synk): only the stride=1 / downsample=None path (the module
    # defaults) is implemented; stride>1 requires a downsample module anyway.
    assert stride == 1

    # TODO(synk): callers that already hold NHWC data should skip these two
    # relayouts; they are outside the kernel and not hidden by the pipeline.
    x = jnp.transpose(x_nchw, (0, 2, 3, 1))      # NCHW -> NHWC
    N, H, W, C = x.shape
    P = folded["P"]
    assert C == folded["C"] and W == folded["W"]
    assert C == P, "un-downsampled residual add requires inplanes == planes"
    WC, WP = W * C, W * P

    # Pick rows-per-step: whole batch per step is best on single-TC v5e/v6e,
    # but keep 2 grid steps when N is even so both v7x TensorCores get work
    # ("parallel" semantics shards the grid across cores).  Cap the block so
    # huge N*H does not blow VMEM.
    nb = N // 2 if (N >= 2 and N % 2 == 0) else N
    nb = max(1, min(nb, max(1, 4096 // H)))
    while N % nb != 0:
        nb -= 1
    mb = nb * H                                   # rows per grid step
    assert mb % 8 == 0, "sublane block dim must be a multiple of 8"
    steps = N // nb

    x2 = x.reshape(N * H, WC)                     # lane-dense input slab

    # VMEM budget derived from actual block sizes (activations double-buffered,
    # weights resident but double-buffered by default), capped for v7x (64 MiB
    # physical -> leave headroom), floored at 16 MiB (v5e scoped default).
    blk_bytes = mb * WC * 4 + mb * WP * 4
    w_bytes = (3 * WC * WP + 3 * WP * WP) * 2
    bn_bytes = 2 * (WC + WP) * 4
    vmem_limit = int(min(max(2 * (2 * blk_bytes + w_bytes) + bn_bytes + (4 << 20),
                             16 << 20), 48 << 20))

    # Advisory cost estimate so XLA schedules neighbors around the custom call.
    flops = 2 * N * H * (3 * WC * WP + 3 * WP * WP) + 8 * N * H * WC
    bytes_accessed = x2.size * 4 + N * H * WP * 4 + w_bytes + bn_bytes
    cost = pl.CostEstimate(flops=int(flops), transcendentals=0,
                           bytes_accessed=int(bytes_accessed))

    out = pl.pallas_call(
        functools.partial(basic_block_kernel, img_h=H),
        out_shape=jax.ShapeDtypeStruct((N * H, WP), x.dtype),
        grid_spec=pltpu.PrefetchScalarGridSpec(
            num_scalar_prefetch=0,
            grid=(steps,),
            in_specs=[
                pl.BlockSpec((mb, WC), lambda i: (i, 0)),
                # weights / BN params: constant index_map (resident each step).
                pl.BlockSpec((3 * WC, WP), lambda i: (0, 0)),
                pl.BlockSpec((3 * WP, WP), lambda i: (0, 0)),
                pl.BlockSpec((1, WC), lambda i: (0, 0)),
                pl.BlockSpec((1, WC), lambda i: (0, 0)),
                pl.BlockSpec((1, WP), lambda i: (0, 0)),
                pl.BlockSpec((1, WP), lambda i: (0, 0)),
                pl.BlockSpec(memory_space=pltpu.MemorySpace.SMEM),
            ],
            out_specs=pl.BlockSpec((mb, WP), lambda i: (i, 0)),
        ),
        compiler_params=pltpu.CompilerParams(
            dimension_semantics=("parallel",),    # shard batch across v7x TCs
            vmem_limit_bytes=vmem_limit,
        ),
        cost_estimate=cost,
    )(x2, folded["w1cat"], folded["w2cat"], folded["s1"], folded["b1"],
      folded["s2"], folded["b2"], folded["alpha"])

    out = out.reshape(N, H, W, P)
    return jnp.transpose(out, (0, 3, 1, 2))       # NHWC -> NCHW


# ---------------------------- pure-JAX reference ----------------------------
def basic_block_ref(x_nchw, params):
    eps = 1e-5
    x = x_nchw.astype(jnp.float32)

    def bn(v, g, b, m, var):
        g, b, m, var = (t[None, :, None, None] for t in (g, b, m, var))
        return (v - m) / jnp.sqrt(var + eps) * g + b

    def prelu(v, a):
        return jnp.where(v >= 0, v, a * v)

    def conv(v, w_hwio):
        w_oihw = jnp.transpose(w_hwio, (3, 2, 0, 1))
        return lax.conv_general_dilated(
            v, w_oihw, window_strides=(1, 1), padding=((1, 1), (1, 1)),
            dimension_numbers=("NCHW", "OIHW", "NCHW"))

    out = bn(x, params["gamma1"], params["beta1"], params["mean1"], params["var1"])
    out = prelu(out, params["alpha"])
    out = conv(out, params["w1"])
    out = bn(out, params["gamma2"], params["beta2"], params["mean2"], params["var2"])
    out = prelu(out, params["alpha"])
    out = conv(out, params["w2"])
    return out + x


if __name__ == "__main__":
    key = jax.random.PRNGKey(0)
    # inplanes == planes is required by the module itself (bn1(planes) applied
    # to an inplanes-channel input, plus the un-downsampled residual add).
    N, C, H, W = 2, 8, 16, 16
    P = C

    ks = jax.random.split(key, 12)
    x = jax.random.normal(ks[0], (N, C, H, W), jnp.float32)
    params = dict(
        w1=0.1 * jax.random.normal(ks[1], (3, 3, C, P), jnp.float32),
        w2=0.1 * jax.random.normal(ks[2], (3, 3, P, P), jnp.float32),
        gamma1=1.0 + 0.1 * jax.random.normal(ks[3], (C,), jnp.float32),
        beta1=0.1 * jax.random.normal(ks[4], (C,), jnp.float32),
        mean1=0.1 * jax.random.normal(ks[5], (C,), jnp.float32),
        var1=jax.random.uniform(ks[6], (C,), jnp.float32, 0.5, 1.5),
        gamma2=1.0 + 0.1 * jax.random.normal(ks[7], (P,), jnp.float32),
        beta2=0.1 * jax.random.normal(ks[8], (P,), jnp.float32),
        mean2=0.1 * jax.random.normal(ks[9], (P,), jnp.float32),
        var2=jax.random.uniform(ks[10], (P,), jnp.float32, 0.5, 1.5),
        alpha=jnp.array(0.25, jnp.float32),   # nn.PReLU default init
    )

    # One-time folding (cacheable across forward calls).
    folded = jax.tree_util.tree_map(
        lambda t: jax.block_until_ready(t) if isinstance(t, jax.Array) else t,
        fold_basic_block_params(params, W))

    out = basic_block(x, folded)
    out = jax.block_until_ready(out)

    ref = basic_block_ref(x, params)
    if out.shape != ref.shape:
        raise AssertionError(f"shape mismatch {out.shape} vs {ref.shape}")
    # bf16 MXU operands (f32 accumulation) -> relaxed tolerance vs the pure
    # f32 reference.
    max_err = float(jnp.max(jnp.abs(out - ref)))
    if not bool(jnp.allclose(out, ref, atol=2e-2, rtol=2e-2)):
        raise AssertionError(f"numerical mismatch vs reference (max abs err {max_err})")
    print("KERNEL_OK")
</pallas_src>

<mosaic_0001>
module attributes {stable_mosaic.version = 11 : i64} {
  func.func @basic_block_kernel(%arg0: i32, %arg1: memref<16x128xf32, #tpu.memory_space<vmem>>, %arg2: memref<384x128xbf16, #tpu.memory_space<vmem>>, %arg3: memref<384x128xbf16, #tpu.memory_space<vmem>>, %arg4: memref<1x128xf32, #tpu.memory_space<vmem>>, %arg5: memref<1x128xf32, #tpu.memory_space<vmem>>, %arg6: memref<1x128xf32, #tpu.memory_space<vmem>>, %arg7: memref<1x128xf32, #tpu.memory_space<vmem>>, %arg8: memref<1xf32, #tpu.memory_space<smem>>, %arg9: memref<16x128xf32, #tpu.memory_space<vmem>>) attributes {dimension_semantics = [#tpu.dimension_semantics<parallel>], iteration_bounds = array<i64: 2>, scalar_prefetch = 0 : i64, scratch_operands = 0 : i64, tpu.core_type = #tpu.core_type<tc>, window_params = [{transform_indices = @transform_0, window_bounds = array<i64: 16, 128>}, {pipeline_mode = #tpu.pipeline_mode<synchronous>, transform_indices = @transform_1, window_bounds = array<i64: 384, 128>}, {pipeline_mode = #tpu.pipeline_mode<synchronous>, transform_indices = @transform_2, window_bounds = array<i64: 384, 128>}, {pipeline_mode = #tpu.pipeline_mode<synchronous>, transform_indices = @transform_3, window_bounds = array<i64: 1, 128>}, {pipeline_mode = #tpu.pipeline_mode<synchronous>, transform_indices = @transform_4, window_bounds = array<i64: 1, 128>}, {pipeline_mode = #tpu.pipeline_mode<synchronous>, transform_indices = @transform_5, window_bounds = array<i64: 1, 128>}, {pipeline_mode = #tpu.pipeline_mode<synchronous>, transform_indices = @transform_6, window_bounds = array<i64: 1, 128>}, {transform_indices = @transform_7, window_bounds = array<i64: 1>}, {transform_indices = @transform_8, window_bounds = array<i64: 16, 128>}]} {
    %c0 = arith.constant 0 : index
    %0 = memref.load %arg8[%c0] : memref<1xf32, #tpu.memory_space<smem>>
    %1 = tpu.iota {dimensions = array<i32: 0>} : vector<16x1xi32>
    %c16_i32 = arith.constant 16 : i32
    %c0_i32 = arith.constant 0 : i32
    %2 = arith.cmpi eq, %c16_i32, %c0_i32 : i32
    %c1_i32 = arith.constant 1 : i32
    %3 = arith.select %2, %c1_i32, %c16_i32 : i32
    %4 = vector.broadcast %3 : i32 to vector<16x1xi32>
    %5 = arith.remsi %1, %4 : vector<16x1xi32>
    %c0_i32_0 = arith.constant 0 : i32
    %6 = vector.broadcast %c0_i32_0 : i32 to vector<16x1xi32>
    %7 = arith.cmpi ne, %5, %6 : vector<16x1xi32>
    %c0_i32_1 = arith.constant 0 : i32
    %8 = vector.broadcast %c0_i32_1 : i32 to vector<16x1xi32>
    %9 = arith.cmpi slt, %5, %8 : vector<16x1xi32>
    %c0_i32_2 = arith.constant 0 : i32
    %10 = arith.cmpi slt, %3, %c0_i32_2 : i32
    %11 = vector.broadcast %10 : i1 to vector<16x1xi1>
    %12 = vector.broadcast %11 : vector<16x1xi1> to vector<16x1xi1>
    %13 = arith.xori %9, %12 : vector<16x1xi1>
    %14 = arith.andi %13, %7 : vector<16x1xi1>
    %15 = vector.broadcast %3 : i32 to vector<16x1xi32>
    %16 = arith.addi %5, %15 : vector<16x1xi32>
    %17 = arith.select %14, %16, %5 : vector<16x1xi1>, vector<16x1xi32>
    %c0_i32_3 = arith.constant 0 : i32
    %18 = vector.broadcast %c0_i32_3 : i32 to vector<16x1xi32>
    %19 = arith.cmpi ne, %17, %18 : vector<16x1xi32>
    %c16_i32_4 = arith.constant 16 : i32
    %c0_i32_5 = arith.constant 0 : i32
    %20 = arith.cmpi eq, %c16_i32_4, %c0_i32_5 : i32
    %c1_i32_6 = arith.constant 1 : i32
    %21 = arith.select %20, %c1_i32_6, %c16_i32_4 : i32
    %22 = vector.broadcast %21 : i32 to vector<16x1xi32>
    %23 = arith.remsi %1, %22 : vector<16x1xi32>
    %c0_i32_7 = arith.constant 0 : i32
    %24 = vector.broadcast %c0_i32_7 : i32 to vector<16x1xi32>
    %25 = arith.cmpi ne, %23, %24 : vector<16x1xi32>
    %c0_i32_8 = arith.constant 0 : i32
    %26 = vector.broadcast %c0_i32_8 : i32 to vector<16x1xi32>
    %27 = arith.cmpi slt, %23, %26 : vector<16x1xi32>
    %c0_i32_9 = arith.constant 0 : i32
    %28 = arith.cmpi slt, %21, %c0_i32_9 : i32
    %29 = vector.broadcast %28 : i1 to vector<16x1xi1>
    %30 = vector.broadcast %29 : vector<16x1xi1> to vector<16x1xi1>
    %31 = arith.xori %27, %30 : vector<16x1xi1>
    %32 = arith.andi %31, %25 : vector<16x1xi1>
    %33 = vector.broadcast %21 : i32 to vector<16x1xi32>
    %34 = arith.addi %23, %33 : vector<16x1xi32>
    %35 = arith.select %32, %34, %23 : vector<16x1xi1>, vector<16x1xi32>
    %c15_i32 = arith.constant 15 : i32
    %36 = vector.broadcast %c15_i32 : i32 to vector<16x1xi32>
    %37 = arith.cmpi ne, %35, %36 : vector<16x1xi32>
    %c0_10 = arith.constant 0 : index
    %c0_11 = arith.constant 0 : index
    %38 = vector.load %arg1[%c0_10, %c0_11] : memref<16x128xf32, #tpu.memory_space<vmem>>, vector<16x128xf32>
    %c0_12 = arith.constant 0 : index
    %c0_13 = arith.constant 0 : index
    %39 = vector.load %arg4[%c0_12, %c0_13] : memref<1x128xf32, #tpu.memory_space<vmem>>, vector<1x128xf32>
    %40 = vector.broadcast %39 : vector<1x128xf32> to vector<16x128xf32>
    %41 = arith.mulf %38, %40 : vector<16x128xf32>
    %c0_14 = arith.constant 0 : index
    %c0_15 = arith.constant 0 : index
    %42 = vector.load %arg5[%c0_14, %c0_15] : memref<1x128xf32, #tpu.memory_space<vmem>>, vector<1x128xf32>
    %43 = vector.broadcast %42 : vector<1x128xf32> to vector<16x128xf32>
    %44 = arith.addf %41, %43 : vector<16x128xf32>
    %cst = arith.constant 0.000000e+00 : f32
    %45 = vector.broadcast %cst : f32 to vector<16x128xf32>
    %46 = arith.cmpf oge, %44, %45 : vector<16x128xf32>
    %47 = vector.broadcast %0 : f32 to vector<16x128xf32>
    %48 = arith.mulf %47, %44 : vector<16x128xf32>
    %49 = arith.select %46, %44, %48 : vector<16x128xi1>, vector<16x128xf32>
    %c1_i32_16 = arith.constant 1 : i32
    %50 = tpu.dynamic_rotate %49 by %c1_i32_16 dim 0 : vector<16x128xf32>, i32 -> vector<16x128xf32>
    %cst_17 = arith.constant 0.000000e+00 : f32
    %51 = vector.shape_cast %19 : vector<16x1xi1> to vector<16x1xi1>
    %52 = vector.broadcast %51 : vector<16x1xi1> to vector<16x128xi1>
    %53 = vector.broadcast %cst_17 : f32 to vector<16x128xf32>
    %54 = arith.select %52, %50, %53 : vector<16x128xi1>, vector<16x128xf32>
    %c15_i32_18 = arith.constant 15 : i32
    %55 = tpu.dynamic_rotate %49 by %c15_i32_18 dim 0 : vector<16x128xf32>, i32 -> vector<16x128xf32>
    %cst_19 = arith.constant 0.000000e+00 : f32
    %56 = vector.shape_cast %37 : vector<16x1xi1> to vector<16x1xi1>
    %57 = vector.broadcast %56 : vector<16x1xi1> to vector<16x128xi1>
    %58 = vector.broadcast %cst_19 : f32 to vector<16x128xf32>
    %59 = arith.select %57, %55, %58 : vector<16x128xi1>, vector<16x128xf32>
    %60 = tpu.concatenate %54, %49, %59 in 1 : vector<16x128xf32>, vector<16x128xf32>, vector<16x128xf32> -> vector<16x384xf32>
    %61 = arith.truncf %60 : vector<16x384xf32> to vector<16x384xbf16>
    %c0_20 = arith.constant 0 : index
    %c0_21 = arith.constant 0 : index
    %62 = vector.load %arg2[%c0_20, %c0_21] : memref<384x128xbf16, #tpu.memory_space<vmem>>, vector<384x128xbf16>
    %cst_22 = arith.constant dense<0.000000e+00> : vector<16x128xf32>
    %63 = tpu.matmul %61, %62, %cst_22 {dimension_numbers = #tpu.dot_dimension_numbers<[1], [0], [0], [1], [0, 0, 1, 1], [], []>} : vector<16x384xbf16>, vector<384x128xbf16>, vector<16x128xf32> -> vector<16x128xf32>
    %c0_23 = arith.constant 0 : index
    %c0_24 = arith.constant 0 : index
    %64 = vector.load %arg6[%c0_23, %c0_24] : memref<1x128xf32, #tpu.memory_space<vmem>>, vector<1x128xf32>
    %65 = vector.broadcast %64 : vector<1x128xf32> to vector<16x128xf32>
    %66 = arith.mulf %63, %65 : vector<16x128xf32>
    %c0_25 = arith.constant 0 : index
    %c0_26 = arith.constant 0 : index
    %67 = vector.load %arg7[%c0_25, %c0_26] : memref<1x128xf32, #tpu.memory_space<vmem>>, vector<1x128xf32>
    %68 = vector.broadcast %67 : vector<1x128xf32> to vector<16x128xf32>
    %69 = arith.addf %66, %68 : vector<16x128xf32>
    %cst_27 = arith.constant 0.000000e+00 : f32
    %70 = vector.broadcast %cst_27 : f32 to vector<16x128xf32>
    %71 = arith.cmpf oge, %69, %70 : vector<16x128xf32>
    %72 = vector.broadcast %0 : f32 to vector<16x128xf32>
    %73 = arith.mulf %72, %69 : vector<16x128xf32>
    %74 = arith.select %71, %69, %73 : vector<16x128xi1>, vector<16x128xf32>
    %c1_i32_28 = arith.constant 1 : i32
    %75 = tpu.dynamic_rotate %74 by %c1_i32_28 dim 0 : vector<16x128xf32>, i32 -> vector<16x128xf32>
    %cst_29 = arith.constant 0.000000e+00 : f32
    %76 = vector.shape_cast %19 : vector<16x1xi1> to vector<16x1xi1>
    %77 = vector.broadcast %76 : vector<16x1xi1> to vector<16x128xi1>
    %78 = vector.broadcast %cst_29 : f32 to vector<16x128xf32>
    %79 = arith.select %77, %75, %78 : vector<16x128xi1>, vector<16x128xf32>
    %c15_i32_30 = arith.constant 15 : i32
    %80 = tpu.dynamic_rotate %74 by %c15_i32_30 dim 0 : vector<16x128xf32>, i32 -> vector<16x128xf32>
    %cst_31 = arith.constant 0.000000e+00 : f32
    %81 = vector.shape_cast %37 : vector<16x1xi1> to vector<16x1xi1>
    %82 = vector.broadcast %81 : vector<16x1xi1> to vector<16x128xi1>
    %83 = vector.broadcast %cst_31 : f32 to vector<16x128xf32>
    %84 = arith.select %82, %80, %83 : vector<16x128xi1>, vector<16x128xf32>
    %85 = tpu.concatenate %79, %74, %84 in 1 : vector<16x128xf32>, vector<16x128xf32>, vector<16x128xf32> -> vector<16x384xf32>
    %86 = arith.truncf %85 : vector<16x384xf32> to vector<16x384xbf16>
    %c0_32 = arith.constant 0 : index
    %c0_33 = arith.constant 0 : index
    %87 = vector.load %arg3[%c0_32, %c0_33] : memref<384x128xbf16, #tpu.memory_space<vmem>>, vector<384x128xbf16>
    %cst_34 = arith.constant dense<0.000000e+00> : vector<16x128xf32>
    %88 = tpu.matmul %86, %87, %cst_34 {dimension_numbers = #tpu.dot_dimension_numbers<[1], [0], [0], [1], [0, 0, 1, 1], [], []>} : vector<16x384xbf16>, vector<384x128xbf16>, vector<16x128xf32> -> vector<16x128xf32>
    %c0_35 = arith.constant 0 : index
    %c0_36 = arith.constant 0 : index
    %89 = vector.load %arg1[%c0_35, %c0_36] : memref<16x128xf32, #tpu.memory_space<vmem>>, vector<16x128xf32>
    %90 = arith.addf %88, %89 : vector<16x128xf32>
    %c0_37 = arith.constant 0 : index
    %c0_38 = arith.constant 0 : index
    %91 = vector.load %arg9[%c0_37, %c0_38] : memref<16x128xf32, #tpu.memory_space<vmem>>, vector<16x128xf32>
    tpu.vector_store %arg9[%c0_37, %c0_38], %90 {strides = array<i32>} : memref<16x128xf32, #tpu.memory_space<vmem>>, vector<16x128xf32>,
    return
  }
  func.func @transform_0(%arg0: i32) -> (i32, i32) {
    %c0_i32 = arith.constant 0 : i32
    %c0_i32_0 = arith.constant 0 : i32
    return %arg0, %c0_i32 : i32, i32
  }
  func.func @transform_1(%arg0: i32) -> (i32, i32) {
    %c0_i32 = arith.constant 0 : i32
    %c0_i32_0 = arith.constant 0 : i32
    %c0_i32_1 = arith.constant 0 : i32
    return %c0_i32, %c0_i32_0 : i32, i32
  }
  func.func @transform_2(%arg0: i32) -> (i32, i32) {
    %c0_i32 = arith.constant 0 : i32
    %c0_i32_0 = arith.constant 0 : i32
    %c0_i32_1 = arith.constant 0 : i32
    return %c0_i32, %c0_i32_0 : i32, i32
  }
  func.func @transform_3(%arg0: i32) -> (i32, i32) {
    %c0_i32 = arith.constant 0 : i32
    %c0_i32_0 = arith.constant 0 : i32
    %c0_i32_1 = arith.constant 0 : i32
    return %c0_i32, %c0_i32_0 : i32, i32
  }
  func.func @transform_4(%arg0: i32) -> (i32, i32) {
    %c0_i32 = arith.constant 0 : i32
    %c0_i32_0 = arith.constant 0 : i32
    %c0_i32_1 = arith.constant 0 : i32
    return %c0_i32, %c0_i32_0 : i32, i32
  }
  func.func @transform_5(%arg0: i32) -> (i32, i32) {
    %c0_i32 = arith.constant 0 : i32
    %c0_i32_0 = arith.constant 0 : i32
    %c0_i32_1 = arith.constant 0 : i32
    return %c0_i32, %c0_i32_0 : i32, i32
  }
  func.func @transform_6(%arg0: i32) -> (i32, i32) {
    %c0_i32 = arith.constant 0 : i32
    %c0_i32_0 = arith.constant 0 : i32
    %c0_i32_1 = arith.constant 0 : i32
    return %c0_i32, %c0_i32_0 : i32, i32
  }
  func.func @transform_7(%arg0: i32) -> i32 {
    %c0_i32 = arith.constant 0 : i32
    %c0_i32_0 = arith.constant 0 : i32
    return %c0_i32 : i32
  }
  func.func @transform_8(%arg0: i32) -> (i32, i32) {
    %c0_i32 = arith.constant 0 : i32
    %c0_i32_0 = arith.constant 0 : i32
    return %arg0, %c0_i32 : i32, i32
  }
}

</mosaic_0001>

<llo_original>
// kernel: tpu_custom_call.1
$region0: #{tpu_custom_call.1}
  #allocation0 [shape = 'u32[]', space=smem, size = 0x4, offset = 0x4, fixed_abs, tag = 'smem constant byte address 0x4 - core index']
  #allocation1 [shape = 'u32[72,128]{1,0:T(1,128)}', space=vmem, size = 0x9000, scoped, tag = 'internal scratch']
  #allocation2 [shape = 'f32[1]{0:T(128)S(6)}', space=smem, size = 0x200, scoped, tag = 'scoped memory for tpu_custom_call.1']
  %s0 = inlined_call_operand.hbm [shape: f32[32,128], index: 0, kind: input, shape index: {}]
  %s1 = inlined_call_operand.hbm [shape: bf16[384,128], index: 1, kind: input, shape index: {}]
  %s2 = inlined_call_operand.hbm [shape: bf16[384,128], index: 2, kind: input, shape index: {}]
  %s3 = inlined_call_operand.vmem [shape: f32[1,128], index: 3, kind: input, shape index: {}]
  %s4 = inlined_call_operand.vmem [shape: f32[1,128], index: 4, kind: input, shape index: {}]
  %s5 = inlined_call_operand.vmem [shape: f32[1,128], index: 5, kind: input, shape index: {}]
  %s6 = inlined_call_operand.vmem [shape: f32[1,128], index: 6, kind: input, shape index: {}]
  %s7 = inlined_call_operand.<no memory space> [shape: f32[1], index: 7, kind: input, shape index: {}]
  %s8 = inlined_call_operand.hbm [shape: f32[32,128], index: 8, kind: output, shape index: {}]
  %s9 = sld [smem:[#allocation0]]
  $region77: #{tpu_custom_call.1} parent=0
    _
  %s11 = ssub.s32 1, %s9
  %s12 = scalar_select 0, %s11, %s9
  %13 = sst [smem:[#allocation2]] %s7
  $region1: #{tpu_custom_call.1} parent=0
    #allocation3 [shape = 'u8[16384]{0}', space=vmem, size = 0x4000, scoped, tag = 'input window, operand 0']
    #allocation4 [shape = 's32[2]{0}', space=sflag, size = 0x8, scoped, tag = 'scoped memory for tpu_custom_call.1']
    #allocation5 [shape = 's32[2]{0}', space=sflag, size = 0x8, scoped, tag = 'scoped memory for tpu_custom_call.1']
    #allocation6 [shape = 'u8[98304]{0}', space=vmem, size = 0x18000, scoped, tag = 'input window, operand 1, single buffered']
    #allocation7 [shape = 's32[1]{0}', space=sflag, size = 0x4, scoped, tag = 'scoped memory for tpu_custom_call.1']
    #allocation8 [shape = 'u8[98304]{0}', space=vmem, size = 0x18000, scoped, tag = 'input window, operand 2, single buffered']
    #allocation9 [shape = 'u8[16384]{0}', space=vmem, size = 0x4000, scoped, tag = 'output window, operand 0']
    %14 = vsyncpa [#allocation4], 0
    %s15 = scalar_lea.sflag [#allocation4], 1
    %16 = vsyncpa %s15, 0
    %17 = vsyncpa [#allocation7], 0
    %18 = vsyncpa [#allocation5], 0
    %s19 = scalar_lea.sflag [#allocation5], 1
    %20 = vsyncpa %s19, 0
    loop: start=0, step=1, limit=4
    $region2: #{tpu_custom_call.1} parent=1 // loop_pre_header
      _
    $region3: #{tpu_custom_call.1} parent=1 // loop_header
      %s22 = sphi 0, %s26
      %p23 = scmp.ge.s32.totalorder %s22, 4
      %s32 = sphi 0, %s34
      %s35 = sphi 0, %s32
      %s36 = sphi 0, %s35
      %s52 = sphi 0, %s36
      %s56 = sphi 0, %s56
      %s58 = sphi 0, %s56
      %s59 = sphi 0, %s58
      %s73 = sphi 0, %s59
      %s77 = sphi 0, %s77
      %s79 = sphi 0, %s77
      %s80 = sphi 0, %s79
      %s94 = sphi 0, %s80
      %s98 = sphi 0, %s98
      %s100 = sphi 0, %s98
      %s101 = sphi 0, %s100
      %s115 = sphi 0, %s101
      %s119 = sphi 0, %s119
      %s121 = sphi 0, %s119
      %s122 = sphi 0, %s121
      %s136 = sphi 0, %s122
      %s140 = sphi 0, %s140
      %s142 = sphi 0, %s140
      %s143 = sphi 0, %s142
      %s157 = sphi 0, %s143
      %s161 = sphi 0, %s161
      %s163 = sphi 0, %s161
      %s164 = sphi 0, %s163
      %s178 = sphi 0, %s164
      %s182 = sphi 0, %s182
      %s184 = sphi 0, %s182
      %s185 = sphi 0, %s184
      %s199 = sphi 0, %s185
      %s205 = sphi 0, %s207
      %s208 = sphi 0, %s205
      %s209 = sphi 0, %s208
      %s225 = sphi 0, %s209
    $region4: #{tpu_custom_call.1} parent=1 // loop_header_branch
      %25 = sbr.rel (%p23) target = $region8
    $region5: #{tpu_custom_call.1} parent=1 // loop_body
      %s27 = ssub.s32 %s22, 1
      %s28 = ssub.s32 %s22, 2
      %s29 = sadd.s32 %s22, 1
      %s30 = ssub.s32 %s22, %s29
      %p31 = scmp.eq.s32.totalorder %s30, 0
      %s33 = sadd.s32 %s32, 1
      %s34 = scalar_select %p31, %s32, %s33
      %p37 = pneg %p31
      %p38 = scmp.eq.s32.totalorder %s22, 1
      %p39 = por %p37, %p38
      %p40 = scmp.ne.s32.totalorder %s32, %s35
      %p41 = scmp.eq.s32.totalorder %s22, 0
      %p42 = por %p40, %p41
      %p43 = scmp.ne.s32.totalorder %s32, %s35
      %p44 = scmp.eq.s32.totalorder %s27, 1
      %p45 = por %p43, %p44
      %p46 = scmp.ne.s32.totalorder %s35, %s36
      %p47 = scmp.eq.s32.totalorder %s27, 0
      %p48 = por %p46, %p47
      %p49 = scmp.ne.s32.totalorder %s35, %s36
      %p50 = scmp.eq.s32.totalorder %s28, 1
      %p51 = por %p49, %p50
      %p53 = scmp.ne.s32.totalorder %s36, %s52
      %p54 = scmp.eq.s32.totalorder %s28, 0
      %p55 = por %p53, %p54
      %s57 = sadd.s32 %s56, 1
      %p60 = scmp.eq.s32.totalorder %s22, 1
      %p61 = scmp.ne.s32.totalorder %s56, %s58
      %p62 = scmp.eq.s32.totalorder %s22, 0
      %p63 = por %p61, %p62
      %p64 = scmp.ne.s32.totalorder %s56, %s58
      %p65 = scmp.eq.s32.totalorder %s27, 1
      %p66 = por %p64, %p65
      %p67 = scmp.ne.s32.totalorder %s58, %s59
      %p68 = scmp.eq.s32.totalorder %s27, 0
      %p69 = por %p67, %p68
      %p70 = scmp.ne.s32.totalorder %s58, %s59
      %p71 = scmp.eq.s32.totalorder %s28, 1
      %p72 = por %p70, %p71
      %p74 = scmp.ne.s32.totalorder %s59, %s73
      %p75 = scmp.eq.s32.totalorder %s28, 0
      %p76 = por %p74, %p75
      %s78 = sadd.s32 %s77, 1
      %p81 = scmp.eq.s32.totalorder %s22, 1
      %p82 = scmp.ne.s32.totalorder %s77, %s79
      %p83 = scmp.eq.s32.totalorder %s22, 0
      %p84 = por %p82, %p83
      %p85 = scmp.ne.s32.totalorder %s77, %s79
      %p86 = scmp.eq.s32.totalorder %s27, 1
      %p87 = por %p85, %p86
      %p88 = scmp.ne.s32.totalorder %s79, %s80
      %p89 = scmp.eq.s32.totalorder %s27, 0
      %p90 = por %p88, %p89
      %p91 = scmp.ne.s32.totalorder %s79, %s80
      %p92 = scmp.eq.s32.totalorder %s28, 1
      %p93 = por %p91, %p92
      %p95 = scmp.ne.s32.totalorder %s80, %s94
      %p96 = scmp.eq.s32.totalorder %s28, 0
      %p97 = por %p95, %p96
      %s99 = sadd.s32 %s98, 1
      %p102 = scmp.eq.s32.totalorder %s22, 1
      %p103 = scmp.ne.s32.totalorder %s98, %s100
      %p104 = scmp.eq.s32.totalorder %s22, 0
      %p105 = por %p103, %p104
      %p106 = scmp.ne.s32.totalorder %s98, %s100
      %p107 = scmp.eq.s32.totalorder %s27, 1
      %p108 = por %p106, %p107
      %p109 = scmp.ne.s32.totalorder %s100, %s101
      %p110 = scmp.eq.s32.totalorder %s27, 0
      %p111 = por %p109, %p110
      %p112 = scmp.ne.s32.totalorder %s100, %s101
      %p113 = scmp.eq.s32.totalorder %s28, 1
      %p114 = por %p112, %p113
      %p116 = scmp.ne.s32.totalorder %s101, %s115
      %p117 = scmp.eq.s32.totalorder %s28, 0
      %p118 = por %p116, %p117
      %s120 = sadd.s32 %s119, 1
      %p123 = scmp.eq.s32.totalorder %s22, 1
      %p124 = scmp.ne.s32.totalorder %s119, %s121
      %p125 = scmp.eq.s32.totalorder %s22, 0
      %p126 = por %p124, %p125
      %p127 = scmp.ne.s32.totalorder %s119, %s121
      %p128 = scmp.eq.s32.totalorder %s27, 1
      %p129 = por %p127, %p128
      %p130 = scmp.ne.s32.totalorder %s121, %s122
      %p131 = scmp.eq.s32.totalorder %s27, 0
      %p132 = por %p130, %p131
      %p133 = scmp.ne.s32.totalorder %s121, %s122
      %p134 = scmp.eq.s32.totalorder %s28, 1
      %p135 = por %p133, %p134
      %p137 = scmp.ne.s32.totalorder %s122, %s136
      %p138 = scmp.eq.s32.totalorder %s28, 0
      %p139 = por %p137, %p138
      %s141 = sadd.s32 %s140, 1
      %p144 = scmp.eq.s32.totalorder %s22, 1
      %p145 = scmp.ne.s32.totalorder %s140, %s142
      %p146 = scmp.eq.s32.totalorder %s22, 0
      %p147 = por %p145, %p146
      %p148 = scmp.ne.s32.totalorder %s140, %s142
      %p149 = scmp.eq.s32.totalorder %s27, 1
      %p150 = por %p148, %p149
      %p151 = scmp.ne.s32.totalorder %s142, %s143
      %p152 = scmp.eq.s32.totalorder %s27, 0
      %p153 = por %p151, %p152
      %p154 = scmp.ne.s32.totalorder %s142, %s143
      %p155 = scmp.eq.s32.totalorder %s28, 1
      %p156 = por %p154, %p155
      %p158 = scmp.ne.s32.totalorder %s143, %s157
      %p159 = scmp.eq.s32.totalorder %s28, 0
      %p160 = por %p158, %p159
      %s162 = sadd.s32 %s161, 1
      %p165 = scmp.eq.s32.totalorder %s22, 1
      %p166 = scmp.ne.s32.totalorder %s161, %s163
      %p167 = scmp.eq.s32.totalorder %s22, 0
      %p168 = por %p166, %p167
      %p169 = scmp.ne.s32.totalorder %s161, %s163
      %p170 = scmp.eq.s32.totalorder %s27, 1
      %p171 = por %p169, %p170
      %p172 = scmp.ne.s32.totalorder %s163, %s164
      %p173 = scmp.eq.s32.totalorder %s27, 0
      %p174 = por %p172, %p173
      %p175 = scmp.ne.s32.totalorder %s163, %s164
      %p176 = scmp.eq.s32.totalorder %s28, 1
      %p177 = por %p175, %p176
      %p179 = scmp.ne.s32.totalorder %s164, %s178
      %p180 = scmp.eq.s32.totalorder %s28, 0
      %p181 = por %p179, %p180
      %s183 = sadd.s32 %s182, 1
      %p186 = scmp.eq.s32.totalorder %s22, 1
      %p187 = scmp.ne.s32.totalorder %s182, %s184
      %p188 = scmp.eq.s32.totalorder %s22, 0
      %p189 = por %p187, %p188
      %p190 = scmp.ne.s32.totalorder %s182, %s184
      %p191 = scmp.eq.s32.totalorder %s27, 1
      %p192 = por %p190, %p191
      %p193 = scmp.ne.s32.totalorder %s184, %s185
      %p194 = scmp.eq.s32.totalorder %s27, 0
      %p195 = por %p193, %p194
      %p196 = scmp.ne.s32.totalorder %s184, %s185
      %p197 = scmp.eq.s32.totalorder %s28, 1
      %p198 = por %p196, %p197
      %p200 = scmp.ne.s32.totalorder %s185, %s199
      %p201 = scmp.eq.s32.totalorder %s28, 0
      %p202 = por %p200, %p201
      %s203 = ssub.s32 %s22, %s29
      %p204 = scmp.eq.s32.totalorder %s203, 0
      %s206 = sadd.s32 %s205, 1
      %s207 = scalar_select %p204, %s205, %s206
      %p210 = pneg %p204
      %p211 = scmp.eq.s32.totalorder %s22, 1
      %p212 = por %p210, %p211
      %p213 = scmp.ne.s32.totalorder %s205, %s208
      %p214 = scmp.eq.s32.totalorder %s22, 0
      %p215 = por %p213, %p214
      %p216 = scmp.ne.s32.totalorder %s205, %s208
      %p217 = scmp.eq.s32.totalorder %s27, 1
      %p218 = por %p216, %p217
      %p219 = scmp.ne.s32.totalorder %s208, %s209
      %p220 = scmp.eq.s32.totalorder %s27, 0
      %p221 = por %p219, %p220
      %p222 = scmp.ne.s32.totalorder %s208, %s209
      %p223 = scmp.eq.s32.totalorder %s28, 1
      %p224 = por %p222, %p223
      %p226 = scmp.ne.s32.totalorder %s209, %s225
      %p227 = scmp.eq.s32.totalorder %s28, 0
      %p228 = por %p226, %p227
      %p229 = scmp.le.s32.totalorder 1, %s22
      %p230 = scmp.lt.s32.totalorder %s22, 3
      %p231 = pnand %p229, %p230
      %p232 = pneg %p231
      // Predicated region
      $region9: #{tpu_custom_call.1} parent=5 // pred_check
        _
      $region10: #{tpu_custom_call.1} parent=5 // pred_check_branch
        %234 = sbr.rel (%p231) target = $region12
      $region11: #{tpu_custom_call.1} parent=5 // pred_region
        %s235 = ssub.s32 %s22, 1
        // Predicated region
        $region13: #{tpu_custom_call.1} parent=11 // pred_check
          %p236 = pneg %p69
        $region14: #{tpu_custom_call.1} parent=11 // pred_check_branch
          %238 = sbr.rel (%p236) target = $region16
        $region15: #{tpu_custom_call.1} parent=11 // pred_region
          %240 = vsyncadd [#allocation7], 0
          %s241 = sshll.u32 %s1, 4
          %s242 = int_to_ptr.hbm [resolvable:$true] %s241
          %s243 = sshll.u32 [#allocation6], 4
          %s244 = int_to_ptr.vmem [resolvable:$true] %s243
          %249 = dma.hbm_to_vmem [thread:$0]  %s242, 3072, %s244, [#allocation7], 64, 64, 4
        $region16: #{tpu_custom_call.1} parent=11 // pred_fallthru
          _
        // Predicated region
        $region17: #{tpu_custom_call.1} parent=11 // pred_check
          %p250 = pneg %p90
        $region18: #{tpu_custom_call.1} parent=11 // pred_check_branch
          %252 = sbr.rel (%p250) target = $region20
        $region19: #{tpu_custom_call.1} parent=11 // pred_region
          %254 = vsyncadd [#allocation7], 0
          %s255 = sshll.u32 %s2, 4
          %s256 = int_to_ptr.hbm [resolvable:$true] %s255
          %s257 = sshll.u32 [#allocation8], 4
          %s258 = int_to_ptr.vmem [resolvable:$true] %s257
          %263 = dma.hbm_to_vmem [thread:$0]  %s256, 3072, %s258, [#allocation7], 64, 64, 4
        $region20: #{tpu_custom_call.1} parent=11 // pred_fallthru
          _
        // Predicated region
        $region21: #{tpu_custom_call.1} parent=11 // pred_check
          %p264 = pneg %p111
        $region22: #{tpu_custom_call.1} parent=11 // pred_check_branch
          %266 = sbr.rel (%p264) target = $region24
        $region23: #{tpu_custom_call.1} parent=11 // pred_region
          _
        $region24: #{tpu_custom_call.1} parent=11 // pred_fallthru
          _
        // Predicated region
        $region25: #{tpu_custom_call.1} parent=11 // pred_check
          %p267 = pneg %p132
        $region26: #{tpu_custom_call.1} parent=11 // pred_check_branch
          %269 = sbr.rel (%p267) target = $region28
        $region27: #{tpu_custom_call.1} parent=11 // pred_region
          _
        $region28: #{tpu_custom_call.1} parent=11 // pred_fallthru
          _
        // Predicated region
        $region29: #{tpu_custom_call.1} parent=11 // pred_check
          %p270 = pneg %p153
        $region30: #{tpu_custom_call.1} parent=11 // pred_check_branch
          %272 = sbr.rel (%p270) target = $region32
        $region31: #{tpu_custom_call.1} parent=11 // pred_region
          _
        $region32: #{tpu_custom_call.1} parent=11 // pred_fallthru
          _
        // Predicated region
        $region33: #{tpu_custom_call.1} parent=11 // pred_check
          %p273 = pneg %p174
        $region34: #{tpu_custom_call.1} parent=11 // pred_check_branch
          %275 = sbr.rel (%p273) target = $region36
        $region35: #{tpu_custom_call.1} parent=11 // pred_region
          _
        $region36: #{tpu_custom_call.1} parent=11 // pred_fallthru
          _
        // Predicated region
        $region37: #{tpu_custom_call.1} parent=11 // pred_check
          %p276 = pneg %p195
        $region38: #{tpu_custom_call.1} parent=11 // pred_check_branch
          %278 = sbr.rel (%p276) target = $region40
        $region39: #{tpu_custom_call.1} parent=11 // pred_region
          _
        $region40: #{tpu_custom_call.1} parent=11 // pred_fallthru
          _
      $region12: #{tpu_custom_call.1} parent=5 // pred_fallthru
        _
      %p279 = scmp.lt.s32.totalorder %s22, 2
      // Predicated region
      $region41: #{tpu_custom_call.1} parent=5 // pred_check
        %p280 = pneg %p279
      $region42: #{tpu_custom_call.1} parent=5 // pred_check_branch
        %282 = sbr.rel (%p280) target = $region44
      $region43: #{tpu_custom_call.1} parent=5 // pred_region
        // Predicated region
        $region45: #{tpu_custom_call.1} parent=43 // pred_check
          %p283 = pneg %p42
        $region46: #{tpu_custom_call.1} parent=43 // pred_check_branch
          %285 = sbr.rel (%p283) target = $region48
        $region47: #{tpu_custom_call.1} parent=43 // pred_region
          %s286 = sand.u32 %s32, 1
          %s287 = scalar_lea.sflag [#allocation4], %s286
          %s288 = sand.u32 %s32, 1
          %s289 = smul.addr %s288, 16
          %s290 = scalar_lea.vmem [#allocation3], %s289
          %s291 = smul.u32 2, %s22
          %293 = vsyncadd %s287, 0
          %s294 = smul.addr %s291, 8
          %s295 = scalar_lea.hbm %s0, %s294
          %s296 = sshll.u32 %s295, 4
          %s297 = int_to_ptr.hbm [resolvable:$true] %s296
          %s298 = sshll.u32 %s290, 4
          %s299 = int_to_ptr.vmem [resolvable:$true] %s298
          %304 = dma.hbm_to_vmem [thread:$0]  %s297, 256, %s299, %s287, 128, 128, 8
        $region48: #{tpu_custom_call.1} parent=43 // pred_fallthru
          _
      $region44: #{tpu_custom_call.1} parent=5 // pred_fallthru
        _
      %p305 = scmp.le.s32.totalorder 1, %s22
      %p306 = scmp.lt.s32.totalorder %s22, 3
      %p307 = pnand %p305, %p306
      %p308 = pneg %p307
      // Predicated region
      $region49: #{tpu_custom_call.1} parent=5 // pred_check
        _
      $region50: #{tpu_custom_call.1} parent=5 // pred_check_branch
        %310 = sbr.rel (%p307) target = $region52
      $region51: #{tpu_custom_call.1} parent=5 // pred_region
        %s311 = ssub.s32 %s22, 1
        %s312 = sand.u32 %s35, 1
        %s313 = scalar_lea.sflag [#allocation4], %s312
        %s314 = sand.u32 %s35, 1
        %s315 = smul.addr %s314, 16
        %s316 = scalar_lea.vmem [#allocation3], %s315
        // Predicated region
        $region53: #{tpu_custom_call.1} parent=51 // pred_check
          %p317 = pneg %p48
        $region54: #{tpu_custom_call.1} parent=51 // pred_check_branch
          %319 = sbr.rel (%p317) target = $region56
        $region55: #{tpu_custom_call.1} parent=51 // pred_region
          %321 = dma.done %s313, 256
        $region56: #{tpu_custom_call.1} parent=51 // pred_fallthru
          _
        // Predicated region
        $region57: #{tpu_custom_call.1} parent=51 // pred_check
          %p322 = pneg %p69
        $region58: #{tpu_custom_call.1} parent=51 // pred_check_branch
          %324 = sbr.rel (%p322) target = $region60
        $region59: #{tpu_custom_call.1} parent=51 // pred_region
          %326 = dma.done [#allocation7], 3072
        $region60: #{tpu_custom_call.1} parent=51 // pred_fallthru
          _
        // Predicated region
        $region61: #{tpu_custom_call.1} parent=51 // pred_check
          %p327 = pneg %p90
        $region62: #{tpu_custom_call.1} parent=51 // pred_check_branch
          %329 = sbr.rel (%p327) target = $region64
        $region63: #{tpu_custom_call.1} parent=51 // pred_region
          %331 = dma.done [#allocation7], 3072
        $region64: #{tpu_custom_call.1} parent=51 // pred_fallthru
          _
        %s332 = sand.u32 %s35, 1
        %s333 = scalar_lea.sflag [#allocation4], %s332
        %s334 = sand.u32 %s35, 1
        %s335 = smul.addr %s334, 16
        %s336 = scalar_lea.vmem [#allocation3], %s335
        %p337 = pneg %p48
        %p338 = pneg %p45
        %p339 = pneg %p69
        %p340 = pneg %p66
        %p341 = pneg %p90
        %p342 = pneg %p87
        %p343 = pneg %p111
        %p344 = pneg %p108
        %p345 = pneg %p132
        %p346 = pneg %p129
        %p347 = pneg %p153
        %p348 = pneg %p150
        %p349 = pneg %p174
        %p350 = pneg %p171
        %p351 = pneg %p195
        %p352 = pneg %p192
        %p353 = pneg %p221
        %p354 = pneg %p218
        %s355 = sand.u32 %s208, 1
        %s356 = scalar_lea.sflag [#allocation5], %s355
        %s357 = sand.u32 %s208, 1
        %s358 = smul.addr %s357, 16
        %s359 = scalar_lea.vmem [#allocation9], %s358
        %s360 = smul.u32 2, %s27
        %s361 = smul.u32 2, %s27
        %s362 = sld [smem:[#allocation2]]
        %v363 = vlaneseq
        %v364 = vshrl.u32 %v363, 7
        %v365 = vadd.s32 %v364, 8
        %vm366 = vcmp.lt.s32.totalorder %v364, 0
        %v367 = vsub.s32 0, %v364
        %v368 = vsel %vm366, %v367, %v364
        %v369 = vshrl.u32 %v368, 4
        %v370 = vand.u32 %v368, 15
        %v371 = vsub.s32 0, %v370
        %v372 = vsel %vm366, %v371, %v370
        %vm373 = vcmp.lt.s32.totalorder %v365, 0
        %v374 = vsub.s32 0, %v365
        %v375 = vsel %vm373, %v374, %v365
        %v376 = vshrl.u32 %v375, 4
        %v377 = vand.u32 %v375, 15
        %v378 = vsub.s32 0, %v377
        %v379 = vsel %vm373, %v378, %v377
        %vm380 = vcmp.ne.s32.totalorder %v372, 0
        %vm381 = vcmp.ne.s32.totalorder %v379, 0
        %vm382 = vcmp.lt.s32.totalorder %v372, 0
        %vm383 = vcmp.lt.s32.totalorder %v379, 0
        %vm384 = vmand %vm382, %vm380
        %vm385 = vmand %vm383, %vm381
        %v386 = vadd.s32 %v372, 16
        %v387 = vadd.s32 %v379, 16
        %v388 = vsel %vm384, %v386, %v372
        %v389 = vsel %vm385, %v387, %v379
        %vm390 = vcmp.ne.s32.totalorder %v388, 0
        %vm391 = vcmp.ne.s32.totalorder %v389, 0
        %vm392 = vcmp.ne.s32.totalorder %v388, 15
        %vm393 = vcmp.ne.s32.totalorder %v389, 15
        %v394 = vld [vmem:[%s316] sm:$0xff]
        %v395 = vld [vmem:[%s316 + $0x8] sm:$0xff]
        %v396 = vld [vmem:[%s3] sm:$0x1]
        %v398 = vperm.slane %v396, 0
        %v400 = vmul.f32 %v394, %v398
        %v401 = vmul.f32 %v395, %v398
        %v402 = vld [vmem:[%s4] sm:$0x1]
        %v404 = vperm.slane %v402, 0
        %v406 = vadd.f32 %v400, %v404
        %v407 = vadd.f32 %v401, %v404
        %vm408 = vcmp.ge.f32.partialorder %v406, 0.0
        %vm409 = vcmp.ge.f32.partialorder %v407, 0.0
        %v410 = vstv %s362
        %v411 = vmul.f32 %v410, %v406
        %v412 = vmul.f32 %v410, %v407
        %v413 = vsel %vm408, %v406, %v411
        %v414 = vsel %vm409, %v407, %v412
        %v415 = vrot.slane %v413, 7
        %v416 = vrot.slane %v414, 7
        %vm417 = vcmp.lt.s32.totalorder %v364, 1
        %v418 = vsel %vm417, %v415, %v416
        %v419 = vsel %vm417, %v416, %v415
        %v420 = vsel %vm390, 1, 0
        %v421 = vsel %vm391, 1, 0
        %vm422 = vcmp.eq.s32.totalorder %v420, 1
        %vm423 = vcmp.eq.s32.totalorder %v421, 1
        %v424 = vsel %vm422, %v419, 0.0
        %v425 = vsel %vm423, %v418, 0.0
        %v426 = vrot.slane %v413, 1
        %v427 = vrot.slane %v414, 1
        %vm428 = vcmp.lt.s32.totalorder %v364, 7
        %v429 = vsel %vm428, %v426, %v427
        %v430 = vsel %vm428, %v427, %v426
        %v431 = vsel %vm392, 1, 0
        %v432 = vsel %vm393, 1, 0
        %vm433 = vcmp.eq.s32.totalorder %v431, 1
        %vm434 = vcmp.eq.s32.totalorder %v432, 1
        %v435 = vsel %vm433, %v429, 0.0
        %v436 = vsel %vm434, %v430, 0.0
        %v437 = vpack.c.bf16 %v425, %v424
        %v438 = vpack.c.bf16 %v414, %v413
        %v439 = vpack.c.bf16 %v436, %v435
        %v440 = vld [vmem:[#allocation6] sm:$0xf]
        %v441 = vld [vmem:[#allocation6 + $0x4] sm:$0xf]
        %v442 = vld [vmem:[#allocation6 + $0x8] sm:$0xf]
        %v443 = vld [vmem:[#allocation6 + $0xc] sm:$0xf]
        %v444 = vld [vmem:[#allocation6 + $0x10] sm:$0xf]
        %v445 = vld [vmem:[#allocation6 + $0x14] sm:$0xf]
        %v446 = vld [vmem:[#allocation6 + $0x18] sm:$0xf]
        %v447 = vld [vmem:[#allocation6 + $0x1c] sm:$0xf]
        %v448 = vld [vmem:[#allocation6 + $0x20] sm:$0xf]
        %v449 = vld [vmem:[#allocation6 + $0x24] sm:$0xf]
        %v450 = vld [vmem:[#allocation6 + $0x28] sm:$0xf]
        %v451 = vld [vmem:[#allocation6 + $0x2c] sm:$0xf]
        %v452 = vld [vmem:[#allocation6 + $0x30] sm:$0xf]
        %v453 = vld [vmem:[#allocation6 + $0x34] sm:$0xf]
        %v454 = vld [vmem:[#allocation6 + $0x38] sm:$0xf]
        %v455 = vld [vmem:[#allocation6 + $0x3c] sm:$0xf]
        %v456 = vld [vmem:[#allocation6 + $0x40] sm:$0xf]
        %v457 = vld [vmem:[#allocation6 + $0x44] sm:$0xf]
        %v458 = vld [vmem:[#allocation6 + $0x48] sm:$0xf]
        %v459 = vld [vmem:[#allocation6 + $0x4c] sm:$0xf]
        %v460 = vld [vmem:[#allocation6 + $0x50] sm:$0xf]
        %v461 = vld [vmem:[#allocation6 + $0x54] sm:$0xf]
        %v462 = vld [vmem:[#allocation6 + $0x58] sm:$0xf]
        %v463 = vld [vmem:[#allocation6 + $0x5c] sm:$0xf]
        %v464 = vld [vmem:[#allocation6 + $0x60] sm:$0xf]
        %v465 = vld [vmem:[#allocation6 + $0x64] sm:$0xf]
        %v466 = vld [vmem:[#allocation6 + $0x68] sm:$0xf]
        %v467 = vld [vmem:[#allocation6 + $0x6c] sm:$0xf]
        %v468 = vld [vmem:[#allocation6 + $0x70] sm:$0xf]
        %v469 = vld [vmem:[#allocation6 + $0x74] sm:$0xf]
        %v470 = vld [vmem:[#allocation6 + $0x78] sm:$0xf]
        %v471 = vld [vmem:[#allocation6 + $0x7c] sm:$0xf]
        %v472 = vld [vmem:[#allocation6 + $0x80] sm:$0xf]
        %v473 = vld [vmem:[#allocation6 + $0x84] sm:$0xf]
        %v474 = vld [vmem:[#allocation6 + $0x88] sm:$0xf]
        %v475 = vld [vmem:[#allocation6 + $0x8c] sm:$0xf]
        %v476 = vld [vmem:[#allocation6 + $0x90] sm:$0xf]
        %v477 = vld [vmem:[#allocation6 + $0x94] sm:$0xf]
        %v478 = vld [vmem:[#allocation6 + $0x98] sm:$0xf]
        %v479 = vld [vmem:[#allocation6 + $0x9c] sm:$0xf]
        %v480 = vld [vmem:[#allocation6 + $0xa0] sm:$0xf]
        %v481 = vld [vmem:[#allocation6 + $0xa4] sm:$0xf]
        %v482 = vld [vmem:[#allocation6 + $0xa8] sm:$0xf]
        %v483 = vld [vmem:[#allocation6 + $0xac] sm:$0xf]
        %v484 = vld [vmem:[#allocation6 + $0xb0] sm:$0xf]
        %v485 = vld [vmem:[#allocation6 + $0xb4] sm:$0xf]
        %v486 = vld [vmem:[#allocation6 + $0xb8] sm:$0xf]
        %v487 = vld [vmem:[#allocation6 + $0xbc] sm:$0xf]
        %v536 = vunpack.c.l.b16 %v440
        %v537 = vunpack.c.l.b16 %v441
        %v538 = vunpack.c.l.b16 %v442
        %v539 = vunpack.c.l.b16 %v443
        %v540 = vunpack.c.l.b16 %v444
        %v541 = vunpack.c.l.b16 %v445
        %v542 = vunpack.c.l.b16 %v446
        %v543 = vunpack.c.l.b16 %v447
        %v544 = vunpack.c.l.b16 %v448
        %v545 = vunpack.c.l.b16 %v449
        %v546 = vunpack.c.l.b16 %v450
        %v547 = vunpack.c.l.b16 %v451
        %v548 = vunpack.c.l.b16 %v452
        %v549 = vunpack.c.l.b16 %v453
        %v550 = vunpack.c.l.b16 %v454
        %v551 = vunpack.c.l.b16 %v455
        %v552 = vunpack.c.l.b16 %v456
        %v553 = vunpack.c.l.b16 %v457
        %v554 = vunpack.c.l.b16 %v458
        %v555 = vunpack.c.l.b16 %v459
        %v556 = vunpack.c.l.b16 %v460
        %v557 = vunpack.c.l.b16 %v461
        %v558 = vunpack.c.l.b16 %v462
        %v559 = vunpack.c.l.b16 %v463
        %v560 = vunpack.c.l.b16 %v464
        %v561 = vunpack.c.l.b16 %v465
        %v562 = vunpack.c.l.b16 %v466
        %v563 = vunpack.c.l.b16 %v467
        %v564 = vunpack.c.l.b16 %v468
        %v565 = vunpack.c.l.b16 %v469
        %v566 = vunpack.c.l.b16 %v470
        %v567 = vunpack.c.l.b16 %v471
        %v568 = vunpack.c.l.b16 %v472
        %v569 = vunpack.c.l.b16 %v473
        %v570 = vunpack.c.l.b16 %v474
        %v571 = vunpack.c.l.b16 %v475
        %v572 = vunpack.c.l.b16 %v476
        %v573 = vunpack.c.l.b16 %v477
        %v574 = vunpack.c.l.b16 %v478
        %v575 = vunpack.c.l.b16 %v479
        %v576 = vunpack.c.l.b16 %v480
        %v577 = vunpack.c.l.b16 %v481
        %v578 = vunpack.c.l.b16 %v482
        %v579 = vunpack.c.l.b16 %v483
        %v580 = vunpack.c.l.b16 %v484
        %v581 = vunpack.c.l.b16 %v485
        %v582 = vunpack.c.l.b16 %v486
        %v583 = vunpack.c.l.b16 %v487
        %v584 = vpack.c.b16 %v537, %v536
        %v585 = vpack.c.b16 %v539, %v538
        %v586 = vpack.c.b16 %v541, %v540
        %v587 = vpack.c.b16 %v543, %v542
        %v588 = vpack.c.b16 %v545, %v544
        %v589 = vpack.c.b16 %v547, %v546
        %v590 = vpack.c.b16 %v549, %v548
        %v591 = vpack.c.b16 %v551, %v550
        %v592 = vpack.c.b16 %v553, %v552
        %v593 = vpack.c.b16 %v555, %v554
        %v594 = vpack.c.b16 %v557, %v556
        %v595 = vpack.c.b16 %v559, %v558
        %v596 = vpack.c.b16 %v561, %v560
        %v597 = vpack.c.b16 %v563, %v562
        %v598 = vpack.c.b16 %v565, %v564
        %v599 = vpack.c.b16 %v567, %v566
        %v600 = vpack.c.b16 %v569, %v568
        %v601 = vpack.c.b16 %v571, %v570
        %v602 = vpack.c.b16 %v573, %v572
        %v603 = vpack.c.b16 %v575, %v574
        %v604 = vpack.c.b16 %v577, %v576
        %v605 = vpack.c.b16 %v579, %v578
        %v606 = vpack.c.b16 %v581, %v580
        %v607 = vpack.c.b16 %v583, %v582
        %632 = vmatpush.bf16.msra.mxu0 %v591
        %633 = vmatpush.bf16.msra.mxu0 %v590
        %634 = vmatpush.bf16.msra.mxu0 %v589
        %635 = vmatpush.bf16.msra.mxu0 %v588
        %636 = vmatpush.bf16.msra.mxu0 %v587
        %637 = vmatpush.bf16.msra.mxu0 %v586
        %638 = vmatpush.bf16.msra.mxu0 %v585
        %639 = vmatpush.bf16.msra.mxu0 %v584
        %640 = vmatmul.bf16.gmra.mxu0 %v437
        %v641 = vpop.f32.mrf.mxu0
        %v642 = vadd.f32 0.0, %v641
        %v643 = vpop.f32.mrf.mxu0
        %v644 = vadd.f32 0.0, %v643
        %645 = vdwg.mxu0
        %646 = vmatpush.bf16.msra.mxu0 %v599
        %647 = vmatpush.bf16.msra.mxu0 %v598
        %648 = vmatpush.bf16.msra.mxu0 %v597
        %649 = vmatpush.bf16.msra.mxu0 %v596
        %650 = vmatpush.bf16.msra.mxu0 %v595
        %651 = vmatpush.bf16.msra.mxu0 %v594
        %652 = vmatpush.bf16.msra.mxu0 %v593
        %653 = vmatpush.bf16.msra.mxu0 %v592
        %654 = vmatmul.bf16.gmra.mxu0 %v438
        %v655 = vpop.f32.mrf.mxu0
        %v656 = vadd.f32 %v642, %v655
        %v657 = vpop.f32.mrf.mxu0
        %v658 = vadd.f32 %v644, %v657
        %659 = vdwg.mxu0
        %660 = vmatpush.bf16.msra.mxu0 %v607
        %661 = vmatpush.bf16.msra.mxu0 %v606
        %662 = vmatpush.bf16.msra.mxu0 %v605
        %663 = vmatpush.bf16.msra.mxu0 %v604
        %664 = vmatpush.bf16.msra.mxu0 %v603
        %665 = vmatpush.bf16.msra.mxu0 %v602
        %666 = vmatpush.bf16.msra.mxu0 %v601
        %667 = vmatpush.bf16.msra.mxu0 %v600
        %668 = vmatmul.bf16.gmra.mxu0 %v439
        %v669 = vpop.f32.mrf.mxu0
        %v670 = vadd.f32 %v656, %v669
        %v671 = vpop.f32.mrf.mxu0
        %v672 = vadd.f32 %v658, %v671
        %673 = vdwg.mxu0
        %v674 = vld [vmem:[%s5] sm:$0x1]
        %v676 = vperm.slane %v674, 0
        %v678 = vmul.f32 %v670, %v676
        %v679 = vmul.f32 %v672, %v676
        %v680 = vld [vmem:[%s6] sm:$0x1]
        %v682 = vperm.slane %v680, 0
        %v684 = vadd.f32 %v678, %v682
        %v685 = vadd.f32 %v679, %v682
        %vm686 = vcmp.ge.f32.partialorder %v684, 0.0
        %vm687 = vcmp.ge.f32.partialorder %v685, 0.0
        %v688 = vmul.f32 %v410, %v684
        %v689 = vmul.f32 %v410, %v685
        %v690 = vsel %vm686, %v684, %v688
        %v691 = vsel %vm687, %v685, %v689
        %v692 = vrot.slane %v690, 7
        %v693 = vrot.slane %v691, 7
        %v694 = vsel %vm417, %v692, %v693
        %v695 = vsel %vm417, %v693, %v692
        %v696 = vsel %vm422, %v695, 0.0
        %v697 = vsel %vm423, %v694, 0.0
        %v698 = vrot.slane %v690, 1
        %v699 = vrot.slane %v691, 1
        %v700 = vsel %vm428, %v698, %v699
        %v701 = vsel %vm428, %v699, %v698
        %v702 = vsel %vm433, %v700, 0.0
        %v703 = vsel %vm434, %v701, 0.0
        %v704 = vpack.c.bf16 %v697, %v696
        %v705 = vpack.c.bf16 %v691, %v690
        %v706 = vpack.c.bf16 %v703, %v702
        %v707 = vld [vmem:[#allocation8] sm:$0xf]
        %v708 = vld [vmem:[#allocation8 + $0x4] sm:$0xf]
        %v709 = vld [vmem:[#allocation8 + $0x8] sm:$0xf]
        %v710 = vld [vmem:[#allocation8 + $0xc] sm:$0xf]
        %v711 = vld [vmem:[#allocation8 + $0x10] sm:$0xf]
        %v712 = vld [vmem:[#allocation8 + $0x14] sm:$0xf]
        %v713 = vld [vmem:[#allocation8 + $0x18] sm:$0xf]
        %v714 = vld [vmem:[#allocation8 + $0x1c] sm:$0xf]
        %v715 = vld [vmem:[#allocation8 + $0x20] sm:$0xf]
        %v716 = vld [vmem:[#allocation8 + $0x24] sm:$0xf]
        %v717 = vld [vmem:[#allocation8 + $0x28] sm:$0xf]
        %v718 = vld [vmem:[#allocation8 + $0x2c] sm:$0xf]
        %v719 = vld [vmem:[#allocation8 + $0x30] sm:$0xf]
        %v720 = vld [vmem:[#allocation8 + $0x34] sm:$0xf]
        %v721 = vld [vmem:[#allocation8 + $0x38] sm:$0xf]
        %v722 = vld [vmem:[#allocation8 + $0x3c] sm:$0xf]
        %v723 = vld [vmem:[#allocation8 + $0x40] sm:$0xf]
        %v724 = vld [vmem:[#allocation8 + $0x44] sm:$0xf]
        %v725 = vld [vmem:[#allocation8 + $0x48] sm:$0xf]
        %v726 = vld [vmem:[#allocation8 + $0x4c] sm:$0xf]
        %v727 = vld [vmem:[#allocation8 + $0x50] sm:$0xf]
        %v728 = vld [vmem:[#allocation8 + $0x54] sm:$0xf]
        %v729 = vld [vmem:[#allocation8 + $0x58] sm:$0xf]
        %v730 = vld [vmem:[#allocation8 + $0x5c] sm:$0xf]
        %v731 = vld [vmem:[#allocation8 + $0x60] sm:$0xf]
        %v732 = vld [vmem:[#allocation8 + $0x64] sm:$0xf]
        %v733 = vld [vmem:[#allocation8 + $0x68] sm:$0xf]
        %v734 = vld [vmem:[#allocation8 + $0x6c] sm:$0xf]
        %v735 = vld [vmem:[#allocation8 + $0x70] sm:$0xf]
        %v736 = vld [vmem:[#allocation8 + $0x74] sm:$0xf]
        %v737 = vld [vmem:[#allocation8 + $0x78] sm:$0xf]
        %v738 = vld [vmem:[#allocation8 + $0x7c] sm:$0xf]
        %v739 = vld [vmem:[#allocation8 + $0x80] sm:$0xf]
        %v740 = vld [vmem:[#allocation8 + $0x84] sm:$0xf]
        %v741 = vld [vmem:[#allocation8 + $0x88] sm:$0xf]
        %v742 = vld [vmem:[#allocation8 + $0x8c] sm:$0xf]
        %v743 = vld [vmem:[#allocation8 + $0x90] sm:$0xf]
        %v744 = vld [vmem:[#allocation8 + $0x94] sm:$0xf]
        %v745 = vld [vmem:[#allocation8 + $0x98] sm:$0xf]
        %v746 = vld [vmem:[#allocation8 + $0x9c] sm:$0xf]
        %v747 = vld [vmem:[#allocation8 + $0xa0] sm:$0xf]
        %v748 = vld [vmem:[#allocation8 + $0xa4] sm:$0xf]
        %v749 = vld [vmem:[#allocation8 + $0xa8] sm:$0xf]
        %v750 = vld [vmem:[#allocation8 + $0xac] sm:$0xf]
        %v751 = vld [vmem:[#allocation8 + $0xb0] sm:$0xf]
        %v752 = vld [vmem:[#allocation8 + $0xb4] sm:$0xf]
        %v753 = vld [vmem:[#allocation8 + $0xb8] sm:$0xf]
        %v754 = vld [vmem:[#allocation8 + $0xbc] sm:$0xf]
        %v803 = vunpack.c.l.b16 %v707
        %v804 = vunpack.c.l.b16 %v708
        %v805 = vunpack.c.l.b16 %v709
        %v806 = vunpack.c.l.b16 %v710
        %v807 = vunpack.c.l.b16 %v711
        %v808 = vunpack.c.l.b16 %v712
        %v809 = vunpack.c.l.b16 %v713
        %v810 = vunpack.c.l.b16 %v714
        %v811 = vunpack.c.l.b16 %v715
        %v812 = vunpack.c.l.b16 %v716
        %v813 = vunpack.c.l.b16 %v717
        %v814 = vunpack.c.l.b16 %v718
        %v815 = vunpack.c.l.b16 %v719
        %v816 = vunpack.c.l.b16 %v720
        %v817 = vunpack.c.l.b16 %v721
        %v818 = vunpack.c.l.b16 %v722
        %v819 = vunpack.c.l.b16 %v723
        %v820 = vunpack.c.l.b16 %v724
        %v821 = vunpack.c.l.b16 %v725
        %v822 = vunpack.c.l.b16 %v726
        %v823 = vunpack.c.l.b16 %v727
        %v824 = vunpack.c.l.b16 %v728
        %v825 = vunpack.c.l.b16 %v729
        %v826 = vunpack.c.l.b16 %v730
        %v827 = vunpack.c.l.b16 %v731
        %v828 = vunpack.c.l.b16 %v732
        %v829 = vunpack.c.l.b16 %v733
        %v830 = vunpack.c.l.b16 %v734
        %v831 = vunpack.c.l.b16 %v735
        %v832 = vunpack.c.l.b16 %v736
        %v833 = vunpack.c.l.b16 %v737
        %v834 = vunpack.c.l.b16 %v738
        %v835 = vunpack.c.l.b16 %v739
        %v836 = vunpack.c.l.b16 %v740
        %v837 = vunpack.c.l.b16 %v741
        %v838 = vunpack.c.l.b16 %v742
        %v839 = vunpack.c.l.b16 %v743
        %v840 = vunpack.c.l.b16 %v744
        %v841 = vunpack.c.l.b16 %v745
        %v842 = vunpack.c.l.b16 %v746
        %v843 = vunpack.c.l.b16 %v747
        %v844 = vunpack.c.l.b16 %v748
        %v845 = vunpack.c.l.b16 %v749
        %v846 = vunpack.c.l.b16 %v750
        %v847 = vunpack.c.l.b16 %v751
        %v848 = vunpack.c.l.b16 %v752
        %v849 = vunpack.c.l.b16 %v753
        %v850 = vunpack.c.l.b16 %v754
        %v851 = vpack.c.b16 %v804, %v803
        %v852 = vpack.c.b16 %v806, %v805
        %v853 = vpack.c.b16 %v808, %v807
        %v854 = vpack.c.b16 %v810, %v809
        %v855 = vpack.c.b16 %v812, %v811
        %v856 = vpack.c.b16 %v814, %v813
        %v857 = vpack.c.b16 %v816, %v815
        %v858 = vpack.c.b16 %v818, %v817
        %v859 = vpack.c.b16 %v820, %v819
        %v860 = vpack.c.b16 %v822, %v821
        %v861 = vpack.c.b16 %v824, %v823
        %v862 = vpack.c.b16 %v826, %v825
        %v863 = vpack.c.b16 %v828, %v827
        %v864 = vpack.c.b16 %v830, %v829
        %v865 = vpack.c.b16 %v832, %v831
        %v866 = vpack.c.b16 %v834, %v833
        %v867 = vpack.c.b16 %v836, %v835
        %v868 = vpack.c.b16 %v838, %v837
        %v869 = vpack.c.b16 %v840, %v839
        %v870 = vpack.c.b16 %v842, %v841
        %v871 = vpack.c.b16 %v844, %v843
        %v872 = vpack.c.b16 %v846, %v845
        %v873 = vpack.c.b16 %v848, %v847
        %v874 = vpack.c.b16 %v850, %v849
        %899 = vmatpush.bf16.msra.mxu0 %v858
        %900 = vmatpush.bf16.msra.mxu0 %v857
        %901 = vmatpush.bf16.msra.mxu0 %v856
        %902 = vmatpush.bf16.msra.mxu0 %v855
        %903 = vmatpush.bf16.msra.mxu0 %v854
        %904 = vmatpush.bf16.msra.mxu0 %v853
        %905 = vmatpush.bf16.msra.mxu0 %v852
        %906 = vmatpush.bf16.msra.mxu0 %v851
        %907 = vmatmul.bf16.gmra.mxu0 %v704
        %v908 = vpop.f32.mrf.mxu0
        %v909 = vadd.f32 %v394, %v908
        %v910 = vpop.f32.mrf.mxu0
        %v911 = vadd.f32 %v395, %v910
        %912 = vdwg.mxu0
        %913 = vmatpush.bf16.msra.mxu0 %v866
        %914 = vmatpush.bf16.msra.mxu0 %v865
        %915 = vmatpush.bf16.msra.mxu0 %v864
        %916 = vmatpush.bf16.msra.mxu0 %v863
        %917 = vmatpush.bf16.msra.mxu0 %v862
        %918 = vmatpush.bf16.msra.mxu0 %v861
        %919 = vmatpush.bf16.msra.mxu0 %v860
        %920 = vmatpush.bf16.msra.mxu0 %v859
        %921 = vmatmul.bf16.gmra.mxu0 %v705
        %v922 = vpop.f32.mrf.mxu0
        %v923 = vadd.f32 %v909, %v922
        %v924 = vpop.f32.mrf.mxu0
        %v925 = vadd.f32 %v911, %v924
        %926 = vdwg.mxu0
        %927 = vmatpush.bf16.msra.mxu0 %v874
        %928 = vmatpush.bf16.msra.mxu0 %v873
        %929 = vmatpush.bf16.msra.mxu0 %v872
        %930 = vmatpush.bf16.msra.mxu0 %v871
        %931 = vmatpush.bf16.msra.mxu0 %v870
        %932 = vmatpush.bf16.msra.mxu0 %v869
        %933 = vmatpush.bf16.msra.mxu0 %v868
        %934 = vmatpush.bf16.msra.mxu0 %v867
        %935 = vmatmul.bf16.gmra.mxu0 %v706
        %v936 = vpop.f32.mrf.mxu0
        %v937 = vadd.f32 %v923, %v936
        %v938 = vpop.f32.mrf.mxu0
        %v939 = vadd.f32 %v925, %v938
        %940 = vdwg.mxu0
        %941 = vst [vmem:[%s359] sm:$0xff] %v937
        %942 = vst [vmem:[%s359 + $0x8] sm:$0xff] %v939
        %s943 = sand.u32 %s208, 1
        %s944 = scalar_lea.sflag [#allocation5], %s943
        %s945 = sand.u32 %s208, 1
        %s946 = smul.addr %s945, 16
        %s947 = scalar_lea.vmem [#allocation9], %s946
        // Predicated region
        $region65: #{tpu_custom_call.1} parent=51 // pred_check
          %p948 = pneg %p218
        $region66: #{tpu_custom_call.1} parent=51 // pred_check_branch
          %950 = sbr.rel (%p948) target = $region68
        $region67: #{tpu_custom_call.1} parent=51 // pred_region
          %s951 = smul.u32 2, %s27
          %953 = vsyncadd %s944, 0
          %s954 = smul.addr %s951, 8
          %s955 = scalar_lea.hbm %s8, %s954
          %s956 = sshll.u32 %s947, 4
          %s957 = int_to_ptr.vmem [resolvable:$true] %s956
          %s958 = sshll.u32 %s955, 4
          %s959 = int_to_ptr.hbm [resolvable:$true] %s958
          %964 = dma.vmem_to_hbm [thread:$0]  %s957, 256, %s959, %s944, 128, 128, 8
        $region68: #{tpu_custom_call.1} parent=51 // pred_fallthru
          _
      $region52: #{tpu_custom_call.1} parent=5 // pred_fallthru
        _
      %p965 = scmp.le.s32.totalorder 2, %s22
      // Predicated region
      $region69: #{tpu_custom_call.1} parent=5 // pred_check
        %p966 = pneg %p965
      $region70: #{tpu_custom_call.1} parent=5 // pred_check_branch
        %968 = sbr.rel (%p966) target = $region72
      $region71: #{tpu_custom_call.1} parent=5 // pred_region
        %s969 = ssub.s32 %s22, 2
        // Predicated region
        $region73: #{tpu_custom_call.1} parent=71 // pred_check
          %p970 = pneg %p224
        $region74: #{tpu_custom_call.1} parent=71 // pred_check_branch
          %972 = sbr.rel (%p970) target = $region76
        $region75: #{tpu_custom_call.1} parent=71 // pred_region
          %s973 = sand.u32 %s209, 1
          %s974 = scalar_lea.sflag [#allocation5], %s973
          %s975 = sand.u32 %s209, 1
          %s976 = smul.addr %s975, 16
          %s977 = scalar_lea.vmem [#allocation9], %s976
          %979 = dma.done %s974, 256
        $region76: #{tpu_custom_call.1} parent=71 // pred_fallthru
          _
      $region72: #{tpu_custom_call.1} parent=5 // pred_fallthru
        _
    $region6: #{tpu_custom_call.1} parent=1 // loop_footer
      %s26 = sadd.s32 1, %s22
    $region7: #{tpu_custom_call.1} parent=1 // loop_footer_branch
      %21 = sbr.rel target = $region3
    $region8: #{tpu_custom_call.1} parent=1 // loop_exit
      _
    %980 = vsyncpa [#allocation4], 1
    %s981 = scalar_lea.sflag [#allocation4], 1
    %982 = vsyncpa %s981, 1
    %983 = vsyncpa [#allocation7], 1
    %984 = vsyncpa [#allocation5], 1
    %s985 = scalar_lea.sflag [#allocation5], 1
    %986 = vsyncpa %s985, 1

</llo_original>
